<compile_context>
chip_gen: v6e
topology: v6e:2x2x1
jax: 0.10.0
libtpu: 0.0.40
codegen_flags: <defaults>
</compile_context>

<pallas_src>
import functools

import jax
import jax.numpy as jnp
from jax import lax
from jax.experimental import pallas as pl
from jax.experimental.pallas import tpu as pltpu

EPS = 1e-5  # nn.BatchNorm1d default eps


def _round_up(v, m):
    return (v + m - 1) // m * m


def _conv_relu_stats_kernel(xc_ref, w_ref, b_ref, stats_ref, *, l_out):
    """Pass 1: conv (im2col matmul) + bias + ReLU -> per-tile per-channel (sum, sumsq).

    xc_ref   : (1, KC_p, TL)      im2col input tile, bf16 (L on lanes)
    w_ref    : (C_out_p, KC_p)    folded conv weight, bf16
    b_ref    : (C_out_p, 1)       conv bias, f32
    stats_ref: (1, 1, 2, C_out_p) per-tile (sum, sumsq) per channel, f32 (channels on lanes)
    """
    j = pl.program_id(1)
    y = jnp.dot(w_ref[...], xc_ref[0], preferred_element_type=jnp.float32)  # MXU, f32 acc
    y = jnp.maximum(y + b_ref[...], 0.0)                                    # bias + ReLU
    # Mask out L-padding columns so they do not contaminate the batch statistics.
    tl = y.shape[1]
    col = j * tl + lax.broadcasted_iota(jnp.int32, y.shape, 1)
    y = jnp.where(col < l_out, y, 0.0)
    s1 = jnp.sum(y, axis=1)                                                 # (C_out_p,)
    s2 = jnp.sum(y * y, axis=1)                                             # (C_out_p,)
    stats_ref[0, 0] = jnp.stack([s1, s2], axis=0)                           # (2, C_out_p)


def _conv_relu_bn_kernel(xc_ref, w_ref, b_ref, scale_ref, shift_ref, o_ref):
    """Pass 2 (recompute): conv + bias + ReLU + per-channel affine normalize, fused.

    o = relu(conv(x) + b) * scale + shift
    scale = gamma * rsqrt(var + eps) ; shift = beta - mean * scale
    """
    y = jnp.dot(w_ref[...], xc_ref[0], preferred_element_type=jnp.float32)
    y = jnp.maximum(y + b_ref[...], 0.0)
    o_ref[0] = y * scale_ref[...] + shift_ref[...]


def tcn_block(x_ncl, weight_oik, bias, gamma, beta, *, dilation, padding):
    """x_ncl: (N, C_in, L). weight_oik: (C_out, C_in, K) (PyTorch layout). Output: (N, C_out, L_out)."""
    n, c_in, l = x_ncl.shape
    c_out, _, k = weight_oik.shape
    l_out = l + 2 * padding - dilation * (k - 1)

    kc = k * c_in
    kc_p = _round_up(kc, 16)       # bf16 sublane packing
    c_out_p = _round_up(c_out, 16)

    # --- generation-aware VMEM budget / tile size ---
    try:
        vmem_cap = int(getattr(pltpu.get_tpu_info(), "vmem_capacity_bytes",
                               64 * 1024 * 1024))
    except Exception:
        vmem_cap = 64 * 1024 * 1024
    # ~48 MiB on v7x (64 MiB VMEM), ~96 MiB on v5e/v6e (128 MiB VMEM), clamped.
    vmem_budget = min(max(vmem_cap * 3 // 4, 32 * 1024 * 1024), 100 * 1024 * 1024)

    def _tile_bytes(t):
        # double-buffered xc (bf16) + out (f32) blocks + resident weight + slack
        return 2 * (kc_p * t * 2 + c_out_p * t * 4) + c_out_p * kc_p * 2 + 64 * 1024

    l_out_p = _round_up(l_out, 128)
    tl = 128
    for cand in (2048, 1024, 512, 256, 128):
        if cand <= l_out_p and l_out_p % cand == 0 and _tile_bytes(cand) <= vmem_budget:
            tl = cand
            break
    # v7x: keep >=2 grid steps on a parallel axis so both TensorCores get work.
    if n == 1 and l_out_p // tl < 2 and l_out_p >= 256:
        tl = max(128, tl // 2)
    n_lt = l_out_p // tl

    # --- wrapper glue: im2col in bf16 (taps folded into the contraction dim) ---
    x_bf = x_ncl.astype(jnp.bfloat16)
    pad_r = padding + (l_out_p - l_out)
    x_pad = jnp.pad(x_bf, ((0, 0), (0, 0), (padding, pad_r)))
    xc = jnp.concatenate(
        [x_pad[:, :, t * dilation: t * dilation + l_out_p] for t in range(k)], axis=1
    )                                                         # (N, K*C_in, L_out_p) bf16
    xc = jnp.pad(xc, ((0, 0), (0, kc_p - kc), (0, 0)))        # (N, KC_p, L_out_p)

    w2 = jnp.transpose(weight_oik, (0, 2, 1)).reshape(c_out, kc).astype(jnp.bfloat16)
    w2 = jnp.pad(w2, ((0, c_out_p - c_out), (0, kc_p - kc)))  # (C_out_p, KC_p)
    b2 = jnp.pad(bias.astype(jnp.float32), (0, c_out_p - c_out)).reshape(c_out_p, 1)

    cparams = pltpu.CompilerParams(
        dimension_semantics=("parallel", "parallel"),
        vmem_limit_bytes=int(vmem_budget),
    )

    # --- pass 1: conv + bias + ReLU -> per-tile BN partial sums only (no y round trip) ---
    stats = pl.pallas_call(
        functools.partial(_conv_relu_stats_kernel, l_out=l_out),
        grid=(n, n_lt),
        in_specs=[
            pl.BlockSpec((1, kc_p, tl), lambda i, j: (i, 0, j)),
            pl.BlockSpec((c_out_p, kc_p), lambda i, j: (0, 0)),
            pl.BlockSpec((c_out_p, 1), lambda i, j: (0, 0)),
        ],
        out_specs=pl.BlockSpec((1, 1, 2, c_out_p), lambda i, j: (i, j, 0, 0)),
        out_shape=jax.ShapeDtypeStruct((n, n_lt, 2, c_out_p), jnp.float32),
        compiler_params=cparams,
    )(xc, w2, b2)

    # --- finalize BN stats: stable parallel (Welford-style) merge of per-tile partials ---
    s1 = stats[:, :, 0, :c_out]                                 # (N, n_lt, C_out)
    s2 = stats[:, :, 1, :c_out]
    counts = jnp.asarray([min(tl, l_out - j * tl) for j in range(n_lt)],
                         dtype=jnp.float32)[None, :, None]      # (1, n_lt, 1)
    total = jnp.float32(n * l_out)
    mean = jnp.sum(s1, axis=(0, 1)) / total                     # (C_out,)
    m_bt = s1 / counts
    m2_bt = s2 - s1 * m_bt                                      # per-tile sum of squared devs
    m2 = jnp.sum(m2_bt, axis=(0, 1)) + jnp.sum(
        counts * (m_bt - mean[None, None, :]) ** 2, axis=(0, 1))
    var = jnp.maximum(m2 / total, 0.0)                          # biased var (training-mode BN)
    inv = lax.rsqrt(var + EPS)
    scale = gamma.astype(jnp.float32) * inv
    shift = beta.astype(jnp.float32) - mean * scale
    scale_p = jnp.pad(scale, (0, c_out_p - c_out)).reshape(c_out_p, 1)
    shift_p = jnp.pad(shift, (0, c_out_p - c_out)).reshape(c_out_p, 1)

    # --- pass 2: recompute conv + ReLU and apply BN in one fused, lane-dense pass ---
    out_p = pl.pallas_call(
        _conv_relu_bn_kernel,
        grid=(n, n_lt),
        in_specs=[
            pl.BlockSpec((1, kc_p, tl), lambda i, j: (i, 0, j)),
            pl.BlockSpec((c_out_p, kc_p), lambda i, j: (0, 0)),
            pl.BlockSpec((c_out_p, 1), lambda i, j: (0, 0)),
            pl.BlockSpec((c_out_p, 1), lambda i, j: (0, 0)),
            pl.BlockSpec((c_out_p, 1), lambda i, j: (0, 0)),
        ],
        out_specs=pl.BlockSpec((1, c_out_p, tl), lambda i, j: (i, 0, j)),
        out_shape=jax.ShapeDtypeStruct((n, c_out_p, l_out_p), jnp.float32),
        compiler_params=cparams,
    )(xc, w2, b2, scale_p, shift_p)

    return out_p[:, :c_out, :l_out]


def tcn_block_reference(x_ncl, weight_oik, bias, gamma, beta, *, dilation, padding):
    """Pure-JAX f32 reference matching PyTorch TCNBlock.forward (training mode)."""
    y = lax.conv_general_dilated(
        x_ncl.astype(jnp.float32),
        weight_oik.astype(jnp.float32),
        window_strides=(1,),
        padding=[(padding, padding)],
        rhs_dilation=(dilation,),
        dimension_numbers=("NCH", "OIH", "NCH"),
    )
    y = y + bias[None, :, None]
    y = jnp.maximum(y, 0.0)
    mean = jnp.mean(y, axis=(0, 2), keepdims=True)
    var = jnp.mean((y - mean) ** 2, axis=(0, 2), keepdims=True)
    y = (y - mean) / jnp.sqrt(var + EPS)
    return y * gamma[None, :, None] + beta[None, :, None]


if __name__ == "__main__":
    # Small, module-consistent shapes: N=2, C_in=4, C_out=8, L=16, K=3, dilation=2, padding=2.
    N, C_IN, C_OUT, L, K, DIL, PAD = 2, 4, 8, 16, 3, 2, 2

    key = jax.random.PRNGKey(0)
    kx, kw, kb, kg, kbt = jax.random.split(key, 5)
    x = jax.random.normal(kx, (N, C_IN, L), dtype=jnp.float32)
    weight = 0.1 * jax.random.normal(kw, (C_OUT, C_IN, K), dtype=jnp.float32)
    bias = 0.1 * jax.random.normal(kb, (C_OUT,), dtype=jnp.float32)
    gamma = 1.0 + 0.1 * jax.random.normal(kg, (C_OUT,), dtype=jnp.float32)
    beta = 0.1 * jax.random.normal(kbt, (C_OUT,), dtype=jnp.float32)

    run = jax.jit(functools.partial(tcn_block, dilation=DIL, padding=PAD))
    out = jax.block_until_ready(run(x, weight, bias, gamma, beta))

    ref = tcn_block_reference(x, weight, bias, gamma, beta, dilation=DIL, padding=PAD)
    L_OUT = L + 2 * PAD - DIL * (K - 1)
    assert out.shape == (N, C_OUT, L_OUT), out.shape
    # bf16 MXU inputs -> loosened tolerance vs. the f32 reference.
    assert jnp.allclose(out, ref, atol=5e-2, rtol=5e-2), float(jnp.max(jnp.abs(out - ref)))

    print("KERNEL_OK")
</pallas_src>

<mosaic_0001>
module attributes {stable_mosaic.version = 11 : i64} {
  func.func @_conv_relu_stats_kernel(%arg0: i32, %arg1: i32, %arg2: memref<1x16x128xbf16, #tpu.memory_space<vmem>>, %arg3: memref<16x16xbf16, #tpu.memory_space<vmem>>, %arg4: memref<16x1xf32, #tpu.memory_space<vmem>>, %arg5: memref<1x1x2x16xf32, #tpu.memory_space<vmem>>) attributes {dimension_semantics = [#tpu.dimension_semantics<parallel>, #tpu.dimension_semantics<parallel>], iteration_bounds = array<i64: 2, 1>, scalar_prefetch = 0 : i64, scratch_operands = 0 : i64, tpu.core_type = #tpu.core_type<tc>, window_params = [{transform_indices = @transform_0, window_bounds = array<i64: 1, 16, 128>}, {pipeline_mode = #tpu.pipeline_mode<synchronous>, transform_indices = @transform_1, window_bounds = array<i64: 16, 16>}, {pipeline_mode = #tpu.pipeline_mode<synchronous>, transform_indices = @transform_2, window_bounds = array<i64: 16, 1>}, {transform_indices = @transform_3, window_bounds = array<i64: 1, 1, 2, 16>}]} {
    %c0 = arith.constant 0 : index
    %c0_0 = arith.constant 0 : index
    %0 = vector.load %arg3[%c0, %c0_0] : memref<16x16xbf16, #tpu.memory_space<vmem>>, vector<16x16xbf16>
    %c0_1 = arith.constant 0 : index
    %c0_2 = arith.constant 0 : index
    %c0_3 = arith.constant 0 : index
    %1 = vector.load %arg2[%c0_1, %c0_2, %c0_3] : memref<1x16x128xbf16, #tpu.memory_space<vmem>>, vector<1x16x128xbf16>
    %2 = vector.shape_cast %1 : vector<1x16x128xbf16> to vector<16x128xbf16>
    %cst = arith.constant dense<0.000000e+00> : vector<16x128xf32>
    %3 = tpu.matmul %0, %2, %cst {dimension_numbers = #tpu.dot_dimension_numbers<[1], [0], [0], [1], [0, 0, 1, 1], [], []>} : vector<16x16xbf16>, vector<16x128xbf16>, vector<16x128xf32> -> vector<16x128xf32>
    %c0_4 = arith.constant 0 : index
    %c0_5 = arith.constant 0 : index
    %4 = vector.load %arg4[%c0_4, %c0_5] : memref<16x1xf32, #tpu.memory_space<vmem>>, vector<16x1xf32>
    %5 = vector.broadcast %4 : vector<16x1xf32> to vector<16x128xf32>
    %6 = arith.addf %3, %5 : vector<16x128xf32>
    %cst_6 = arith.constant 0.000000e+00 : f32
    %7 = vector.broadcast %cst_6 : f32 to vector<16x128xf32>
    %8 = arith.maximumf %6, %7 : vector<16x128xf32>
    %c128_i32 = arith.constant 128 : i32
    %9 = arith.muli %arg1, %c128_i32 : i32
    %10 = tpu.iota {dimensions = array<i32: 1>} : vector<16x128xi32>
    %11 = vector.broadcast %9 : i32 to vector<16x128xi32>
    %12 = arith.addi %11, %10 : vector<16x128xi32>
    %c16_i32 = arith.constant 16 : i32
    %13 = vector.broadcast %c16_i32 : i32 to vector<16x128xi32>
    %14 = arith.cmpi slt, %12, %13 : vector<16x128xi32>
    %cst_7 = arith.constant 0.000000e+00 : f32
    %15 = vector.broadcast %cst_7 : f32 to vector<16x128xf32>
    %16 = arith.select %14, %8, %15 : vector<16x128xi1>, vector<16x128xf32>
    %cst_8 = arith.constant dense<0.000000e+00> : vector<16xf32>
    %17 = vector.multi_reduction <add>, %16, %cst_8 [1] : vector<16x128xf32> to vector<16xf32>
    %18 = arith.mulf %16, %16 : vector<16x128xf32>
    %cst_9 = arith.constant dense<0.000000e+00> : vector<16xf32>
    %19 = vector.multi_reduction <add>, %18, %cst_9 [1] : vector<16x128xf32> to vector<16xf32>
    %20 = vector.shape_cast %17 : vector<16xf32> to vector<1x16xf32>
    %21 = vector.shape_cast %19 : vector<16xf32> to vector<1x16xf32>
    %22 = tpu.concatenate %20, %21 in 0 : vector<1x16xf32>, vector<1x16xf32> -> vector<2x16xf32>
    %c0_10 = arith.constant 0 : index
    %c0_11 = arith.constant 0 : index
    %c0_12 = arith.constant 0 : index
    %c0_13 = arith.constant 0 : index
    %23 = vector.load %arg5[%c0_10, %c0_11, %c0_12, %c0_13] : memref<1x1x2x16xf32, #tpu.memory_space<vmem>>, vector<1x1x2x16xf32>
    %24 = vector.shape_cast %23 : vector<1x1x2x16xf32> to vector<2x16xf32>
    %25 = vector.shape_cast %22 : vector<2x16xf32> to vector<1x1x2x16xf32>
    tpu.vector_store %arg5[%c0_10, %c0_11, %c0_12, %c0_13], %25 {strides = array<i32>} : memref<1x1x2x16xf32, #tpu.memory_space<vmem>>, vector<1x1x2x16xf32>,
    return
  }
  func.func @transform_0(%arg0: i32, %arg1: i32) -> (i32, i32, i32) {
    %c0_i32 = arith.constant 0 : i32
    %c0_i32_0 = arith.constant 0 : i32
    return %arg0, %c0_i32, %arg1 : i32, i32, i32
  }
  func.func @transform_1(%arg0: i32, %arg1: i32) -> (i32, i32) {
    %c0_i32 = arith.constant 0 : i32
    %c0_i32_0 = arith.constant 0 : i32
    %c0_i32_1 = arith.constant 0 : i32
    return %c0_i32, %c0_i32_0 : i32, i32
  }
  func.func @transform_2(%arg0: i32, %arg1: i32) -> (i32, i32) {
    %c0_i32 = arith.constant 0 : i32
    %c0_i32_0 = arith.constant 0 : i32
    %c0_i32_1 = arith.constant 0 : i32
    return %c0_i32, %c0_i32_0 : i32, i32
  }
  func.func @transform_3(%arg0: i32, %arg1: i32) -> (i32, i32, i32, i32) {
    %c0_i32 = arith.constant 0 : i32
    %c0_i32_0 = arith.constant 0 : i32
    %c0_i32_1 = arith.constant 0 : i32
    return %arg0, %arg1, %c0_i32, %c0_i32_0 : i32, i32, i32, i32
  }
}

module attributes {stable_mosaic.version = 11 : i64} {
  func.func @_conv_relu_bn_kernel(%arg0: i32, %arg1: i32, %arg2: memref<1x16x128xbf16, #tpu.memory_space<vmem>>, %arg3: memref<16x16xbf16, #tpu.memory_space<vmem>>, %arg4: memref<16x1xf32, #tpu.memory_space<vmem>>, %arg5: memref<16x1xf32, #tpu.memory_space<vmem>>, %arg6: memref<16x1xf32, #tpu.memory_space<vmem>>, %arg7: memref<1x16x128xf32, #tpu.memory_space<vmem>>) attributes {dimension_semantics = [#tpu.dimension_semantics<parallel>, #tpu.dimension_semantics<parallel>], iteration_bounds = array<i64: 2, 1>, scalar_prefetch = 0 : i64, scratch_operands = 0 : i64, tpu.core_type = #tpu.core_type<tc>, window_params = [{transform_indices = @transform_0, window_bounds = array<i64: 1, 16, 128>}, {pipeline_mode = #tpu.pipeline_mode<synchronous>, transform_indices = @transform_1, window_bounds = array<i64: 16, 16>}, {pipeline_mode = #tpu.pipeline_mode<synchronous>, transform_indices = @transform_2, window_bounds = array<i64: 16, 1>}, {pipeline_mode = #tpu.pipeline_mode<synchronous>, transform_indices = @transform_3, window_bounds = array<i64: 16, 1>}, {pipeline_mode = #tpu.pipeline_mode<synchronous>, transform_indices = @transform_4, window_bounds = array<i64: 16, 1>}, {transform_indices = @transform_5, window_bounds = array<i64: 1, 16, 128>}]} {
    %c0 = arith.constant 0 : index
    %c0_0 = arith.constant 0 : index
    %0 = vector.load %arg3[%c0, %c0_0] : memref<16x16xbf16, #tpu.memory_space<vmem>>, vector<16x16xbf16>
    %c0_1 = arith.constant 0 : index
    %c0_2 = arith.constant 0 : index
    %c0_3 = arith.constant 0 : index
    %1 = vector.load %arg2[%c0_1, %c0_2, %c0_3] : memref<1x16x128xbf16, #tpu.memory_space<vmem>>, vector<1x16x128xbf16>
    %2 = vector.shape_cast %1 : vector<1x16x128xbf16> to vector<16x128xbf16>
    %cst = arith.constant dense<0.000000e+00> : vector<16x128xf32>
    %3 = tpu.matmul %0, %2, %cst {dimension_numbers = #tpu.dot_dimension_numbers<[1], [0], [0], [1], [0, 0, 1, 1], [], []>} : vector<16x16xbf16>, vector<16x128xbf16>, vector<16x128xf32> -> vector<16x128xf32>
    %c0_4 = arith.constant 0 : index
    %c0_5 = arith.constant 0 : index
    %4 = vector.load %arg4[%c0_4, %c0_5] : memref<16x1xf32, #tpu.memory_space<vmem>>, vector<16x1xf32>
    %5 = vector.broadcast %4 : vector<16x1xf32> to vector<16x128xf32>
    %6 = arith.addf %3, %5 : vector<16x128xf32>
    %cst_6 = arith.constant 0.000000e+00 : f32
    %7 = vector.broadcast %cst_6 : f32 to vector<16x128xf32>
    %8 = arith.maximumf %6, %7 : vector<16x128xf32>
    %c0_7 = arith.constant 0 : index
    %c0_8 = arith.constant 0 : index
    %9 = vector.load %arg5[%c0_7, %c0_8] : memref<16x1xf32, #tpu.memory_space<vmem>>, vector<16x1xf32>
    %10 = vector.broadcast %9 : vector<16x1xf32> to vector<16x128xf32>
    %11 = arith.mulf %8, %10 : vector<16x128xf32>
    %c0_9 = arith.constant 0 : index
    %c0_10 = arith.constant 0 : index
    %12 = vector.load %arg6[%c0_9, %c0_10] : memref<16x1xf32, #tpu.memory_space<vmem>>, vector<16x1xf32>
    %13 = vector.broadcast %12 : vector<16x1xf32> to vector<16x128xf32>
    %14 = arith.addf %11, %13 : vector<16x128xf32>
    %c0_11 = arith.constant 0 : index
    %c0_12 = arith.constant 0 : index
    %c0_13 = arith.constant 0 : index
    %15 = vector.load %arg7[%c0_11, %c0_12, %c0_13] : memref<1x16x128xf32, #tpu.memory_space<vmem>>, vector<1x16x128xf32>
    %16 = vector.shape_cast %15 : vector<1x16x128xf32> to vector<16x128xf32>
    %17 = vector.shape_cast %14 : vector<16x128xf32> to vector<1x16x128xf32>
    tpu.vector_store %arg7[%c0_11, %c0_12, %c0_13], %17 {strides = array<i32>} : memref<1x16x128xf32, #tpu.memory_space<vmem>>, vector<1x16x128xf32>,
    return
  }
  func.func @transform_0(%arg0: i32, %arg1: i32) -> (i32, i32, i32) {
    %c0_i32 = arith.constant 0 : i32
    %c0_i32_0 = arith.constant 0 : i32
    return %arg0, %c0_i32, %arg1 : i32, i32, i32
  }
  func.func @transform_1(%arg0: i32, %arg1: i32) -> (i32, i32) {
    %c0_i32 = arith.constant 0 : i32
    %c0_i32_0 = arith.constant 0 : i32
    %c0_i32_1 = arith.constant 0 : i32
    return %c0_i32, %c0_i32_0 : i32, i32
  }
  func.func @transform_2(%arg0: i32, %arg1: i32) -> (i32, i32) {
    %c0_i32 = arith.constant 0 : i32
    %c0_i32_0 = arith.constant 0 : i32
    %c0_i32_1 = arith.constant 0 : i32
    return %c0_i32, %c0_i32_0 : i32, i32
  }
  func.func @transform_3(%arg0: i32, %arg1: i32) -> (i32, i32) {
    %c0_i32 = arith.constant 0 : i32
    %c0_i32_0 = arith.constant 0 : i32
    %c0_i32_1 = arith.constant 0 : i32
    return %c0_i32, %c0_i32_0 : i32, i32
  }
  func.func @transform_4(%arg0: i32, %arg1: i32) -> (i32, i32) {
    %c0_i32 = arith.constant 0 : i32
    %c0_i32_0 = arith.constant 0 : i32
    %c0_i32_1 = arith.constant 0 : i32
    return %c0_i32, %c0_i32_0 : i32, i32
  }
  func.func @transform_5(%arg0: i32, %arg1: i32) -> (i32, i32, i32) {
    %c0_i32 = arith.constant 0 : i32
    %c0_i32_0 = arith.constant 0 : i32
    return %arg0, %c0_i32, %arg1 : i32, i32, i32
  }
}

</mosaic_0001>

<llo_original>
// kernel: tcn_block.2
$region0: #{tcn_block.2}
  #allocation0 [shape = 'u32[]', space=smem, size = 0x4, offset = 0x4, fixed_abs, tag = 'smem constant byte address 0x4 - core index']
  #allocation1 [shape = 'u32[144,128]{1,0:T(1,128)}', space=vmem, size = 0x12000, scoped, tag = 'internal scratch']
  %s0 = inlined_call_operand.vmem [shape: bf16[2,16,128], index: 0, kind: input, shape index: {}]
  %s1 = inlined_call_operand.vmem [shape: bf16[16,16], index: 1, kind: input, shape index: {}]
  %s2 = inlined_call_operand.vmem [shape: f32[16,1], index: 2, kind: input, shape index: {}]
  %s3 = inlined_call_operand.vmem [shape: f32[2,1,2,16], index: 3, kind: output, shape index: {}]
  %s4 = sld [smem:[#allocation0]]
  $region45: #{tcn_block.2} parent=0
    _
  %s6 = ssub.s32 1, %s4
  %s7 = scalar_select 0, %s6, %s4
  loop: start=0, step=1, limit=4
  $region2: #{tcn_block.2} parent=0 // loop_pre_header
    _
  $region3: #{tcn_block.2} parent=0 // loop_header
    %s9 = sphi 0, %s13
    %p10 = scmp.ge.s32.totalorder %s9, 4
    %s16 = sphi 0, %s28
    %s17 = sphi 0, %s24
    %s18 = sphi 0, %s16
    %s19 = sphi 0, %s17
    %s20 = sphi 0, %s18
    %s21 = sphi 0, %s19
    %s33 = sphi 0, %s35
    %s36 = sphi 0, %s33
    %s37 = sphi 0, %s36
    %s53 = sphi 0, %s37
    %s57 = sphi 0, %s57
    %s59 = sphi 0, %s57
    %s60 = sphi 0, %s59
    %s74 = sphi 0, %s60
    %s78 = sphi 0, %s78
    %s80 = sphi 0, %s78
    %s81 = sphi 0, %s80
    %s95 = sphi 0, %s81
    %s103 = sphi 0, %s105
    %s106 = sphi 0, %s103
    %s107 = sphi 0, %s106
    %s123 = sphi 0, %s107
  $region4: #{tcn_block.2} parent=0 // loop_header_branch
    %12 = sbr.rel (%p10) target = $region8
  $region5: #{tcn_block.2} parent=0 // loop_body
    %s14 = ssub.s32 %s9, 1
    %s15 = ssub.s32 %s9, 2
    %s22 = sadd.s32 1, %s17
    %p23 = scmp.ge.s32.totalorder %s22, 1
    %s24 = scalar_select %p23, 0, %s22
    %s25 = sadd.s32 1, %s16
    %s26 = scalar_select %p23, %s25, %s16
    %p27 = scmp.ge.s32.totalorder %s26, 2
    %s28 = scalar_select %p27, 0, %s26
    %s29 = ssub.s32 %s16, %s28
    %s30 = ssub.s32 %s17, %s24
    %s31 = sor.u32 %s29, %s30
    %p32 = scmp.eq.s32.totalorder %s31, 0
    %s34 = sadd.s32 %s33, 1
    %s35 = scalar_select %p32, %s33, %s34
    %p38 = pneg %p32
    %p39 = scmp.eq.s32.totalorder %s9, 1
    %p40 = por %p38, %p39
    %p41 = scmp.ne.s32.totalorder %s33, %s36
    %p42 = scmp.eq.s32.totalorder %s9, 0
    %p43 = por %p41, %p42
    %p44 = scmp.ne.s32.totalorder %s33, %s36
    %p45 = scmp.eq.s32.totalorder %s14, 1
    %p46 = por %p44, %p45
    %p47 = scmp.ne.s32.totalorder %s36, %s37
    %p48 = scmp.eq.s32.totalorder %s14, 0
    %p49 = por %p47, %p48
    %p50 = scmp.ne.s32.totalorder %s36, %s37
    %p51 = scmp.eq.s32.totalorder %s15, 1
    %p52 = por %p50, %p51
    %p54 = scmp.ne.s32.totalorder %s37, %s53
    %p55 = scmp.eq.s32.totalorder %s15, 0
    %p56 = por %p54, %p55
    %s58 = sadd.s32 %s57, 1
    %p61 = scmp.eq.s32.totalorder %s9, 1
    %p62 = scmp.ne.s32.totalorder %s57, %s59
    %p63 = scmp.eq.s32.totalorder %s9, 0
    %p64 = por %p62, %p63
    %p65 = scmp.ne.s32.totalorder %s57, %s59
    %p66 = scmp.eq.s32.totalorder %s14, 1
    %p67 = por %p65, %p66
    %p68 = scmp.ne.s32.totalorder %s59, %s60
    %p69 = scmp.eq.s32.totalorder %s14, 0
    %p70 = por %p68, %p69
    %p71 = scmp.ne.s32.totalorder %s59, %s60
    %p72 = scmp.eq.s32.totalorder %s15, 1
    %p73 = por %p71, %p72
    %p75 = scmp.ne.s32.totalorder %s60, %s74
    %p76 = scmp.eq.s32.totalorder %s15, 0
    %p77 = por %p75, %p76
    %s79 = sadd.s32 %s78, 1
    %p82 = scmp.eq.s32.totalorder %s9, 1
    %p83 = scmp.ne.s32.totalorder %s78, %s80
    %p84 = scmp.eq.s32.totalorder %s9, 0
    %p85 = por %p83, %p84
    %p86 = scmp.ne.s32.totalorder %s78, %s80
    %p87 = scmp.eq.s32.totalorder %s14, 1
    %p88 = por %p86, %p87
    %p89 = scmp.ne.s32.totalorder %s80, %s81
    %p90 = scmp.eq.s32.totalorder %s14, 0
    %p91 = por %p89, %p90
    %p92 = scmp.ne.s32.totalorder %s80, %s81
    %p93 = scmp.eq.s32.totalorder %s15, 1
    %p94 = por %p92, %p93
    %p96 = scmp.ne.s32.totalorder %s81, %s95
    %p97 = scmp.eq.s32.totalorder %s15, 0
    %p98 = por %p96, %p97
    %s99 = ssub.s32 %s16, %s28
    %s100 = ssub.s32 %s17, %s24
    %s101 = sor.u32 %s99, %s100
    %p102 = scmp.eq.s32.totalorder %s101, 0
    %s104 = sadd.s32 %s103, 1
    %s105 = scalar_select %p102, %s103, %s104
    %p108 = pneg %p102
    %p109 = scmp.eq.s32.totalorder %s9, 1
    %p110 = por %p108, %p109
    %p111 = scmp.ne.s32.totalorder %s103, %s106
    %p112 = scmp.eq.s32.totalorder %s9, 0
    %p113 = por %p111, %p112
    %p114 = scmp.ne.s32.totalorder %s103, %s106
    %p115 = scmp.eq.s32.totalorder %s14, 1
    %p116 = por %p114, %p115
    %p117 = scmp.ne.s32.totalorder %s106, %s107
    %p118 = scmp.eq.s32.totalorder %s14, 0
    %p119 = por %p117, %p118
    %p120 = scmp.ne.s32.totalorder %s106, %s107
    %p121 = scmp.eq.s32.totalorder %s15, 1
    %p122 = por %p120, %p121
    %p124 = scmp.ne.s32.totalorder %s107, %s123
    %p125 = scmp.eq.s32.totalorder %s15, 0
    %p126 = por %p124, %p125
    %p127 = scmp.le.s32.totalorder 1, %s9
    %p128 = scmp.lt.s32.totalorder %s9, 3
    %p129 = pnand %p127, %p128
    %p130 = pneg %p129
    // Predicated region
    $region9: #{tcn_block.2} parent=5 // pred_check
      _
    $region10: #{tcn_block.2} parent=5 // pred_check_branch
      %132 = sbr.rel (%p129) target = $region12
    $region11: #{tcn_block.2} parent=5 // pred_region
      %s133 = ssub.s32 %s9, 1
      // Predicated region
      $region13: #{tcn_block.2} parent=11 // pred_check
        %p134 = pneg %p70
      $region14: #{tcn_block.2} parent=11 // pred_check_branch
        %136 = sbr.rel (%p134) target = $region16
      $region15: #{tcn_block.2} parent=11 // pred_region
        _
      $region16: #{tcn_block.2} parent=11 // pred_fallthru
        _
      // Predicated region
      $region17: #{tcn_block.2} parent=11 // pred_check
        %p137 = pneg %p91
      $region18: #{tcn_block.2} parent=11 // pred_check_branch
        %139 = sbr.rel (%p137) target = $region20
      $region19: #{tcn_block.2} parent=11 // pred_region
        _
      $region20: #{tcn_block.2} parent=11 // pred_fallthru
        _
    $region12: #{tcn_block.2} parent=5 // pred_fallthru
      _
    %p140 = scmp.lt.s32.totalorder %s9, 2
    // Predicated region
    $region21: #{tcn_block.2} parent=5 // pred_check
      %p141 = pneg %p140
    $region22: #{tcn_block.2} parent=5 // pred_check_branch
      %143 = sbr.rel (%p141) target = $region24
    $region23: #{tcn_block.2} parent=5 // pred_region
      // Predicated region
      $region25: #{tcn_block.2} parent=23 // pred_check
        %p144 = pneg %p43
      $region26: #{tcn_block.2} parent=23 // pred_check_branch
        %146 = sbr.rel (%p144) target = $region28
      $region27: #{tcn_block.2} parent=23 // pred_region
        %p147 = scmp.lt.s32.totalorder %s16, 1
        %s148 = scalar_select %p147, %s16, 1
        %p149 = scmp.lt.s32.totalorder %s17, 0
        %s150 = scalar_select %p149, %s17, 0
        %s151 = smul.addr %s148, 2
        %s152 = sadd.s32 %s150, %s151
        %s153 = smul.addr %s152, 4
        %s154 = scalar_lea.vmem %s0, %s153
      $region28: #{tcn_block.2} parent=23 // pred_fallthru
        _
    $region24: #{tcn_block.2} parent=5 // pred_fallthru
      _
    %p155 = scmp.le.s32.totalorder 1, %s9
    %p156 = scmp.lt.s32.totalorder %s9, 3
    %p157 = pnand %p155, %p156
    %p158 = pneg %p157
    // Predicated region
    $region29: #{tcn_block.2} parent=5 // pred_check
      _
    $region30: #{tcn_block.2} parent=5 // pred_check_branch
      %160 = sbr.rel (%p157) target = $region32
    $region31: #{tcn_block.2} parent=5 // pred_region
      %s161 = ssub.s32 %s9, 1
      %p162 = scmp.lt.s32.totalorder %s18, 1
      %s163 = scalar_select %p162, %s18, 1
      %p164 = scmp.lt.s32.totalorder %s19, 0
      %s165 = scalar_select %p164, %s19, 0
      %s166 = smul.addr %s163, 2
      %s167 = sadd.s32 %s165, %s166
      %s168 = smul.addr %s167, 4
      %s169 = scalar_lea.vmem %s0, %s168
      %p170 = pneg %p49
      %p171 = pneg %p46
      %p172 = pneg %p70
      %p173 = pneg %p67
      %p174 = pneg %p91
      %p175 = pneg %p88
      %p176 = pneg %p119
      %p177 = pneg %p116
      %p178 = scmp.lt.s32.totalorder %s18, 1
      %s179 = scalar_select %p178, %s18, 1
      %p180 = scmp.lt.s32.totalorder %s19, 0
      %s181 = scalar_select %p180, %s19, 0
      %s182 = sadd.s32 %s181, %s179
      %s183 = smul.addr %s182, 2
      %s184 = scalar_lea.vmem %s3, %s183
      %p185 = scmp.lt.s32.totalorder %s18, 1
      %s186 = scalar_select %p185, %s18, 1
      %p187 = scmp.lt.s32.totalorder %s19, 0
      %s188 = scalar_select %p187, %s19, 0
      %s189 = smul.addr %s186, 2
      %s190 = sadd.s32 %s188, %s189
      %s191 = smul.addr %s190, 4
      %s192 = scalar_lea.vmem %s0, %s191
      %p193 = scmp.lt.s32.totalorder %s18, 1
      %s194 = scalar_select %p193, %s18, 1
      %p195 = scmp.lt.s32.totalorder %s19, 0
      %s196 = scalar_select %p195, %s19, 0
      %s197 = sadd.s32 %s196, %s194
      %s198 = smul.addr %s197, 2
      %s199 = scalar_lea.vmem %s3, %s198
      %v201 = vld [vmem:[%s1] sm:$0xf]
      %v202 = vld [vmem:[%s1 + $0x4] sm:$0xf]
      %v203 = vld [vmem:[%s192] sm:$0xf]
      %v204 = vld [vmem:[%s192 + $0x4] sm:$0xf]
      %v205 = vld [vmem:[%s2] sm:$0xff]
      %v206 = vld [vmem:[%s2 + $0x8] sm:$0xff]
      %208 = vset.pattern.permute.xlu0 0
      %209 = vperm.xlu0 %208, %v205
      %v210 = vpop.permute.xlu0 %209
      %213 = vset.pattern.permute.xlu0 0
      %214 = vperm.xlu0 %213, %v206
      %v215 = vpop.permute.xlu0 %214
      %v219 = vunpack.c.l.b16 %v201
      %v220 = vunpack.c.l.b16 %v202
      %v221 = vpack.c.b16 %v220, %v219
      %v224 = vunpack.c.l.b16 %v203
      %v225 = vunpack.c.l.b16 %v204
      %v226 = vpack.c.b16 %v225, %v224
      %vm228 = vcmask 130048
      %v230 = vsel %vm228, %v221, 0
      %232 = vmatprep.subr.bf16.mxu0 0
      %233 = vmatpush1.bf16.msra.mxu0 0
      %234 = vmatprep.subr.bf16.mxu0 0
      %235 = vmatpush1.bf16.msra.mxu0 0
      %236 = vmatprep.subr.bf16.mxu0 0
      %237 = vmatpush1.bf16.msra.mxu0 0
      %238 = vmatprep.subr.bf16.mxu0 0
      %239 = vmatpush1.bf16.msra.mxu0 0
      %240 = vmatprep.subr.bf16.mxu0 0
      %241 = vmatpush1.bf16.msra.mxu0 0
      %242 = vmatprep.subr.bf16.mxu0 0
      %243 = vmatpush1.bf16.msra.mxu0 0
      %244 = vmatprep.subr.bf16.mxu0 0
      %245 = vmatpush1.bf16.msra.mxu0 0
      %246 = vmatprep.subr.bf16.mxu0 0
      %247 = vmatpush1.bf16.msra.mxu0 %v226
      %248 = vmatprep.subr.bf16.mxu0 0
      %249 = vmatpush2.bf16.msra.mxu0 0
      %250 = vmatprep.subr.bf16.mxu0 0
      %251 = vmatpush2.bf16.msra.mxu0 0
      %252 = vmatprep.subr.bf16.mxu0 0
      %253 = vmatpush2.bf16.msra.mxu0 0
      %254 = vmatprep.subr.bf16.mxu0 0
      %255 = vmatpush2.bf16.msra.mxu0 0
      %256 = vmatprep.subr.bf16.mxu0 0
      %257 = vmatpush2.bf16.msra.mxu0 0
      %258 = vmatprep.subr.bf16.mxu0 0
      %259 = vmatpush2.bf16.msra.mxu0 0
      %260 = vmatprep.subr.bf16.mxu0 0
      %261 = vmatpush2.bf16.msra.mxu0 0
      %262 = vmatprep.subr.bf16.mxu0 0
      %263 = vmatpush2.bf16.msra.mxu0 0
      %264 = vmatprep.mubr.bf16.mxu0 0
      %265 = vmatmul.mubr.bf16.gmra.mxu0 %v230
      %v266 = vpop.f32.mrf.mxu0
      %v267 = vadd.f32 %v210, %v266
      %v268 = vpop.f32.mrf.mxu0
      %v269 = vpop.f32.mrf.mxu0
      %v270 = vadd.f32 %v215, %v269
      %v271 = vpop.f32.mrf.mxu0
      %272 = vdwg.mxu0
      %v273 = vmax.f32 %v267, 0.0
      %v274 = vmax.f32 %v270, 0.0
      %s275 = smul.u32 %s19, 128
      %v276 = vlaneseq
      %v277 = vand.u32 %v276, 127
      %v278 = vstv %s275
      %v279 = vadd.s32 %v278, %v277
      %vm280 = vcmp.lt.s32.totalorder %v279, 16
      %v281 = vsel %vm280, %v273, 0.0
      %v282 = vsel %vm280, %v274, 0.0
      %283 = vadd.xlane.f32.xlu0 %v281
      %v284 = vpop.xlane.xlu0 %283
      %285 = vadd.xlane.f32.xlu0 %v282
      %v286 = vpop.xlane.xlu0 %285
      %v287 = vmul.f32 %v281, %v281
      %v288 = vmul.f32 %v282, %v282
      %289 = vadd.xlane.f32.xlu0 %v287
      %v290 = vpop.xlane.xlu0 %289
      %291 = vadd.xlane.f32.xlu0 %v288
      %v292 = vpop.xlane.xlu0 %291
      %v295 = vlaneseq
      %v296 = vshrl.u32 %v295, 7
      %v297 = vsub.s32 %v277, %v296
      %v298 = vrot.slane %v284, %v297
      %v299 = vadd.s32 %v277, 4294967288
      %v300 = vlaneseq
      %v301 = vshrl.u32 %v300, 7
      %v302 = vsub.s32 %v299, %v301
      %v303 = vrot.slane %v286, %v302
      %vm304 = vcmask 130112
      %v305 = vsel %vm304, %v303, %v298
      %v309 = vlaneseq
      %v310 = vshrl.u32 %v309, 7
      %v311 = vsub.s32 %v277, %v310
      %v312 = vrot.slane %v290, %v311
      %v313 = vlaneseq
      %v314 = vshrl.u32 %v313, 7
      %v315 = vsub.s32 %v299, %v314
      %v316 = vrot.slane %v292, %v315
      %v317 = vsel %vm304, %v316, %v312
      %vm319 = vcmask 1040384
      %v320 = vsel %vm319, %v305, %v317
      %vm321 = vcmask 123904
      %322 = vst.msk [vmem:[%s199] sm:$0x3] %vm321, %v320
      %p323 = scmp.lt.s32.totalorder %s18, 1
      %s324 = scalar_select %p323, %s18, 1
      %p325 = scmp.lt.s32.totalorder %s19, 0
      %s326 = scalar_select %p325, %s19, 0
      %s327 = sadd.s32 %s326, %s324
      %s328 = smul.addr %s327, 2
      %s329 = scalar_lea.vmem %s3, %s328
      // Predicated region
      $region33: #{tcn_block.2} parent=31 // pred_check
        %p330 = pneg %p116
      $region34: #{tcn_block.2} parent=31 // pred_check_branch
        %332 = sbr.rel (%p330) target = $region36
      $region35: #{tcn_block.2} parent=31 // pred_region
        _
      $region36: #{tcn_block.2} parent=31 // pred_fallthru
        _
    $region32: #{tcn_block.2} parent=5 // pred_fallthru
      _
    %p333 = scmp.le.s32.totalorder 2, %s9
    // Predicated region
    $region37: #{tcn_block.2} parent=5 // pred_check
      %p334 = pneg %p333
    $region38: #{tcn_block.2} parent=5 // pred_check_branch
      %336 = sbr.rel (%p334) target = $region40
    $region39: #{tcn_block.2} parent=5 // pred_region
      %s337 = ssub.s32 %s9, 2
      // Predicated region
      $region41: #{tcn_block.2} parent=39 // pred_check
        %p338 = pneg %p122
      $region42: #{tcn_block.2} parent=39 // pred_check_branch
        %340 = sbr.rel (%p338) target = $region44
      $region43: #{tcn_block.2} parent=39 // pred_region
        %p341 = scmp.lt.s32.totalorder %s20, 1
        %s342 = scalar_select %p341, %s20, 1
        %p343 = scmp.lt.s32.totalorder %s21, 0
        %s344 = scalar_select %p343, %s21, 0
        %s345 = sadd.s32 %s344, %s342
        %s346 = smul.addr %s345, 2
        %s347 = scalar_lea.vmem %s3, %s346
      $region44: #{tcn_block.2} parent=39 // pred_fallthru
        _
    $region40: #{tcn_block.2} parent=5 // pred_fallthru
      _
  $region6: #{tcn_block.2} parent=0 // loop_footer
    %s13 = sadd.s32 1, %s9
  $region7: #{tcn_block.2} parent=0 // loop_footer_branch
    %8 = sbr.rel target = $region3
  $region8: #{tcn_block.2} parent=0 // loop_exit
    _

// kernel: tcn_block.3
$region0: #{tcn_block.3}
  #allocation0 [shape = 'u32[]', space=smem, size = 0x4, offset = 0x4, fixed_abs, tag = 'smem constant byte address 0x4 - core index']
  #allocation1 [shape = 'u32[144,128]{1,0:T(1,128)}', space=vmem, size = 0x12000, scoped, tag = 'internal scratch']
  %s0 = inlined_call_operand.vmem [shape: bf16[2,16,128], index: 0, kind: input, shape index: {}]
  %s1 = inlined_call_operand.vmem [shape: bf16[16,16], index: 1, kind: input, shape index: {}]
  %s2 = inlined_call_operand.vmem [shape: f32[16,1], index: 2, kind: input, shape index: {}]
  %s3 = inlined_call_operand.vmem [shape: f32[16,1], index: 3, kind: input, shape index: {}]
  %s4 = inlined_call_operand.vmem [shape: f32[16,1], index: 4, kind: input, shape index: {}]
  %s5 = inlined_call_operand.vmem [shape: f32[2,16,128], index: 5, kind: output, shape index: {}]
  %s6 = sld [smem:[#allocation0]]
  $region53: #{tcn_block.3} parent=0
    _
  %s8 = ssub.s32 1, %s6
  %s9 = scalar_select 0, %s8, %s6
  loop: start=0, step=1, limit=4
  $region2: #{tcn_block.3} parent=0 // loop_pre_header
    _
  $region3: #{tcn_block.3} parent=0 // loop_header
    %s11 = sphi 0, %s15
    %p12 = scmp.ge.s32.totalorder %s11, 4
    %s18 = sphi 0, %s30
    %s19 = sphi 0, %s26
    %s20 = sphi 0, %s18
    %s21 = sphi 0, %s19
    %s22 = sphi 0, %s20
    %s23 = sphi 0, %s21
    %s35 = sphi 0, %s37
    %s38 = sphi 0, %s35
    %s39 = sphi 0, %s38
    %s55 = sphi 0, %s39
    %s59 = sphi 0, %s59
    %s61 = sphi 0, %s59
    %s62 = sphi 0, %s61
    %s76 = sphi 0, %s62
    %s80 = sphi 0, %s80
    %s82 = sphi 0, %s80
    %s83 = sphi 0, %s82
    %s97 = sphi 0, %s83
    %s101 = sphi 0, %s101
    %s103 = sphi 0, %s101
    %s104 = sphi 0, %s103
    %s118 = sphi 0, %s104
    %s122 = sphi 0, %s122
    %s124 = sphi 0, %s122
    %s125 = sphi 0, %s124
    %s139 = sphi 0, %s125
    %s147 = sphi 0, %s149
    %s150 = sphi 0, %s147
    %s151 = sphi 0, %s150
    %s167 = sphi 0, %s151
  $region4: #{tcn_block.3} parent=0 // loop_header_branch
    %14 = sbr.rel (%p12) target = $region8
  $region5: #{tcn_block.3} parent=0 // loop_body
    %s16 = ssub.s32 %s11, 1
    %s17 = ssub.s32 %s11, 2
    %s24 = sadd.s32 1, %s19
    %p25 = scmp.ge.s32.totalorder %s24, 1
    %s26 = scalar_select %p25, 0, %s24
    %s27 = sadd.s32 1, %s18
    %s28 = scalar_select %p25, %s27, %s18
    %p29 = scmp.ge.s32.totalorder %s28, 2
    %s30 = scalar_select %p29, 0, %s28
    %s31 = ssub.s32 %s18, %s30
    %s32 = ssub.s32 %s19, %s26
    %s33 = sor.u32 %s31, %s32
    %p34 = scmp.eq.s32.totalorder %s33, 0
    %s36 = sadd.s32 %s35, 1
    %s37 = scalar_select %p34, %s35, %s36
    %p40 = pneg %p34
    %p41 = scmp.eq.s32.totalorder %s11, 1
    %p42 = por %p40, %p41
    %p43 = scmp.ne.s32.totalorder %s35, %s38
    %p44 = scmp.eq.s32.totalorder %s11, 0
    %p45 = por %p43, %p44
    %p46 = scmp.ne.s32.totalorder %s35, %s38
    %p47 = scmp.eq.s32.totalorder %s16, 1
    %p48 = por %p46, %p47
    %p49 = scmp.ne.s32.totalorder %s38, %s39
    %p50 = scmp.eq.s32.totalorder %s16, 0
    %p51 = por %p49, %p50
    %p52 = scmp.ne.s32.totalorder %s38, %s39
    %p53 = scmp.eq.s32.totalorder %s17, 1
    %p54 = por %p52, %p53
    %p56 = scmp.ne.s32.totalorder %s39, %s55
    %p57 = scmp.eq.s32.totalorder %s17, 0
    %p58 = por %p56, %p57
    %s60 = sadd.s32 %s59, 1
    %p63 = scmp.eq.s32.totalorder %s11, 1
    %p64 = scmp.ne.s32.totalorder %s59, %s61
    %p65 = scmp.eq.s32.totalorder %s11, 0
    %p66 = por %p64, %p65
    %p67 = scmp.ne.s32.totalorder %s59, %s61
    %p68 = scmp.eq.s32.totalorder %s16, 1
    %p69 = por %p67, %p68
    %p70 = scmp.ne.s32.totalorder %s61, %s62
    %p71 = scmp.eq.s32.totalorder %s16, 0
    %p72 = por %p70, %p71
    %p73 = scmp.ne.s32.totalorder %s61, %s62
    %p74 = scmp.eq.s32.totalorder %s17, 1
    %p75 = por %p73, %p74
    %p77 = scmp.ne.s32.totalorder %s62, %s76
    %p78 = scmp.eq.s32.totalorder %s17, 0
    %p79 = por %p77, %p78
    %s81 = sadd.s32 %s80, 1
    %p84 = scmp.eq.s32.totalorder %s11, 1
    %p85 = scmp.ne.s32.totalorder %s80, %s82
    %p86 = scmp.eq.s32.totalorder %s11, 0
    %p87 = por %p85, %p86
    %p88 = scmp.ne.s32.totalorder %s80, %s82
    %p89 = scmp.eq.s32.totalorder %s16, 1
    %p90 = por %p88, %p89
    %p91 = scmp.ne.s32.totalorder %s82, %s83
    %p92 = scmp.eq.s32.totalorder %s16, 0
    %p93 = por %p91, %p92
    %p94 = scmp.ne.s32.totalorder %s82, %s83
    %p95 = scmp.eq.s32.totalorder %s17, 1
    %p96 = por %p94, %p95
    %p98 = scmp.ne.s32.totalorder %s83, %s97
    %p99 = scmp.eq.s32.totalorder %s17, 0
    %p100 = por %p98, %p99
    %s102 = sadd.s32 %s101, 1
    %p105 = scmp.eq.s32.totalorder %s11, 1
    %p106 = scmp.ne.s32.totalorder %s101, %s103
    %p107 = scmp.eq.s32.totalorder %s11, 0
    %p108 = por %p106, %p107
    %p109 = scmp.ne.s32.totalorder %s101, %s103
    %p110 = scmp.eq.s32.totalorder %s16, 1
    %p111 = por %p109, %p110
    %p112 = scmp.ne.s32.totalorder %s103, %s104
    %p113 = scmp.eq.s32.totalorder %s16, 0
    %p114 = por %p112, %p113
    %p115 = scmp.ne.s32.totalorder %s103, %s104
    %p116 = scmp.eq.s32.totalorder %s17, 1
    %p117 = por %p115, %p116
    %p119 = scmp.ne.s32.totalorder %s104, %s118
    %p120 = scmp.eq.s32.totalorder %s17, 0
    %p121 = por %p119, %p120
    %s123 = sadd.s32 %s122, 1
    %p126 = scmp.eq.s32.totalorder %s11, 1
    %p127 = scmp.ne.s32.totalorder %s122, %s124
    %p128 = scmp.eq.s32.totalorder %s11, 0
    %p129 = por %p127, %p128
    %p130 = scmp.ne.s32.totalorder %s122, %s124
    %p131 = scmp.eq.s32.totalorder %s16, 1
    %p132 = por %p130, %p131
    %p133 = scmp.ne.s32.totalorder %s124, %s125
    %p134 = scmp.eq.s32.totalorder %s16, 0
    %p135 = por %p133, %p134
    %p136 = scmp.ne.s32.totalorder %s124, %s125
    %p137 = scmp.eq.s32.totalorder %s17, 1
    %p138 = por %p136, %p137
    %p140 = scmp.ne.s32.totalorder %s125, %s139
    %p141 = scmp.eq.s32.totalorder %s17, 0
    %p142 = por %p140, %p141
    %s143 = ssub.s32 %s18, %s30
    %s144 = ssub.s32 %s19, %s26
    %s145 = sor.u32 %s143, %s144
    %p146 = scmp.eq.s32.totalorder %s145, 0
    %s148 = sadd.s32 %s147, 1
    %s149 = scalar_select %p146, %s147, %s148
    %p152 = pneg %p146
    %p153 = scmp.eq.s32.totalorder %s11, 1
    %p154 = por %p152, %p153
    %p155 = scmp.ne.s32.totalorder %s147, %s150
    %p156 = scmp.eq.s32.totalorder %s11, 0
    %p157 = por %p155, %p156
    %p158 = scmp.ne.s32.totalorder %s147, %s150
    %p159 = scmp.eq.s32.totalorder %s16, 1
    %p160 = por %p158, %p159
    %p161 = scmp.ne.s32.totalorder %s150, %s151
    %p162 = scmp.eq.s32.totalorder %s16, 0
    %p163 = por %p161, %p162
    %p164 = scmp.ne.s32.totalorder %s150, %s151
    %p165 = scmp.eq.s32.totalorder %s17, 1
    %p166 = por %p164, %p165
    %p168 = scmp.ne.s32.totalorder %s151, %s167
    %p169 = scmp.eq.s32.totalorder %s17, 0
    %p170 = por %p168, %p169
    %p171 = scmp.le.s32.totalorder 1, %s11
    %p172 = scmp.lt.s32.totalorder %s11, 3
    %p173 = pnand %p171, %p172
    %p174 = pneg %p173
    // Predicated region
    $region9: #{tcn_block.3} parent=5 // pred_check
      _
    $region10: #{tcn_block.3} parent=5 // pred_check_branch
      %176 = sbr.rel (%p173) target = $region12
    $region11: #{tcn_block.3} parent=5 // pred_region
      %s177 = ssub.s32 %s11, 1
      // Predicated region
      $region13: #{tcn_block.3} parent=11 // pred_check
        %p178 = pneg %p72
      $region14: #{tcn_block.3} parent=11 // pred_check_branch
        %180 = sbr.rel (%p178) target = $region16
      $region15: #{tcn_block.3} parent=11 // pred_region
        _
      $region16: #{tcn_block.3} parent=11 // pred_fallthru
        _
      // Predicated region
      $region17: #{tcn_block.3} parent=11 // pred_check
        %p181 = pneg %p93
      $region18: #{tcn_block.3} parent=11 // pred_check_branch
        %183 = sbr.rel (%p181) target = $region20
      $region19: #{tcn_block.3} parent=11 // pred_region
        _
      $region20: #{tcn_block.3} parent=11 // pred_fallthru
        _
      // Predicated region
      $region21: #{tcn_block.3} parent=11 // pred_check
        %p184 = pneg %p114
      $region22: #{tcn_block.3} parent=11 // pred_check_branch
        %186 = sbr.rel (%p184) target = $region24
      $region23: #{tcn_block.3} parent=11 // pred_region
        _
      $region24: #{tcn_block.3} parent=11 // pred_fallthru
        _
      // Predicated region
      $region25: #{tcn_block.3} parent=11 // pred_check
        %p187 = pneg %p135
      $region26: #{tcn_block.3} parent=11 // pred_check_branch
        %189 = sbr.rel (%p187) target = $region28
      $region27: #{tcn_block.3} parent=11 // pred_region
        _
      $region28: #{tcn_block.3} parent=11 // pred_fallthru
        _
    $region12: #{tcn_block.3} parent=5 // pred_fallthru
      _
    %p190 = scmp.lt.s32.totalorder %s11, 2
    // Predicated region
    $region29: #{tcn_block.3} parent=5 // pred_check
      %p191 = pneg %p190
    $region30: #{tcn_block.3} parent=5 // pred_check_branch
      %193 = sbr.rel (%p191) target = $region32
    $region31: #{tcn_block.3} parent=5 // pred_region
      // Predicated region
      $region33: #{tcn_block.3} parent=31 // pred_check
        %p194 = pneg %p45
      $region34: #{tcn_block.3} parent=31 // pred_check_branch
        %196 = sbr.rel (%p194) target = $region36
      $region35: #{tcn_block.3} parent=31 // pred_region
        %p197 = scmp.lt.s32.totalorder %s18, 1
        %s198 = scalar_select %p197, %s18, 1
        %p199 = scmp.lt.s32.totalorder %s19, 0
        %s200 = scalar_select %p199, %s19, 0
        %s201 = smul.addr %s198, 2
        %s202 = sadd.s32 %s200, %s201
        %s203 = smul.addr %s202, 4
        %s204 = scalar_lea.vmem %s0, %s203
      $region36: #{tcn_block.3} parent=31 // pred_fallthru
        _
    $region32: #{tcn_block.3} parent=5 // pred_fallthru
      _
    %p205 = scmp.le.s32.totalorder 1, %s11
    %p206 = scmp.lt.s32.totalorder %s11, 3
    %p207 = pnand %p205, %p206
    %p208 = pneg %p207
    // Predicated region
    $region37: #{tcn_block.3} parent=5 // pred_check
      _
    $region38: #{tcn_block.3} parent=5 // pred_check_branch
      %210 = sbr.rel (%p207) target = $region40
    $region39: #{tcn_block.3} parent=5 // pred_region
      %s211 = ssub.s32 %s11, 1
      %p212 = scmp.lt.s32.totalorder %s20, 1
      %s213 = scalar_select %p212, %s20, 1
      %p214 = scmp.lt.s32.totalorder %s21, 0
      %s215 = scalar_select %p214, %s21, 0
      %s216 = smul.addr %s213, 2
      %s217 = sadd.s32 %s215, %s216
      %s218 = smul.addr %s217, 4
      %s219 = scalar_lea.vmem %s0, %s218
      %p220 = pneg %p51
      %p221 = pneg %p48
      %p222 = pneg %p72
      %p223 = pneg %p69
      %p224 = pneg %p93
      %p225 = pneg %p90
      %p226 = pneg %p114
      %p227 = pneg %p111
      %p228 = pneg %p135
      %p229 = pneg %p132
      %p230 = pneg %p163
      %p231 = pneg %p160
      %p232 = scmp.lt.s32.totalorder %s20, 1
      %s233 = scalar_select %p232, %s20, 1
      %p234 = scmp.lt.s32.totalorder %s21, 0
      %s235 = scalar_select %p234, %s21, 0
      %s236 = smul.addr %s233, 2
      %s237 = sadd.s32 %s235, %s236
      %s238 = smul.addr %s237, 8
      %s239 = scalar_lea.vmem %s5, %s238
      %p240 = scmp.lt.s32.totalorder %s20, 1
      %s241 = scalar_select %p240, %s20, 1
      %p242 = scmp.lt.s32.totalorder %s21, 0
      %s243 = scalar_select %p242, %s21, 0
      %s244 = smul.addr %s241, 2
      %s245 = sadd.s32 %s243, %s244
      %s246 = smul.addr %s245, 4
      %s247 = scalar_lea.vmem %s0, %s246
      %p248 = scmp.lt.s32.totalorder %s20, 1
      %s249 = scalar_select %p248, %s20, 1
      %p250 = scmp.lt.s32.totalorder %s21, 0
      %s251 = scalar_select %p250, %s21, 0
      %s252 = smul.addr %s249, 2
      %s253 = sadd.s32 %s251, %s252
      %s254 = smul.addr %s253, 8
      %s255 = scalar_lea.vmem %s5, %s254
      %v257 = vld [vmem:[%s1] sm:$0xf]
      %v258 = vld [vmem:[%s1 + $0x4] sm:$0xf]
      %v259 = vld [vmem:[%s247] sm:$0xf]
      %v260 = vld [vmem:[%s247 + $0x4] sm:$0xf]
      %v261 = vld [vmem:[%s2] sm:$0xff]
      %v262 = vld [vmem:[%s2 + $0x8] sm:$0xff]
      %264 = vset.pattern.permute.xlu0 0
      %265 = vperm.xlu0 %264, %v261
      %v266 = vpop.permute.xlu0 %265
      %269 = vset.pattern.permute.xlu0 0
      %270 = vperm.xlu0 %269, %v262
      %v271 = vpop.permute.xlu0 %270
      %v275 = vunpack.c.l.b16 %v257
      %v276 = vunpack.c.l.b16 %v258
      %v277 = vpack.c.b16 %v276, %v275
      %v280 = vunpack.c.l.b16 %v259
      %v281 = vunpack.c.l.b16 %v260
      %v282 = vpack.c.b16 %v281, %v280
      %vm284 = vcmask 130048
      %v286 = vsel %vm284, %v277, 0
      %288 = vmatprep.subr.bf16.mxu0 0
      %289 = vmatpush1.bf16.msra.mxu0 0
      %290 = vmatprep.subr.bf16.mxu0 0
      %291 = vmatpush1.bf16.msra.mxu0 0
      %292 = vmatprep.subr.bf16.mxu0 0
      %293 = vmatpush1.bf16.msra.mxu0 0
      %294 = vmatprep.subr.bf16.mxu0 0
      %295 = vmatpush1.bf16.msra.mxu0 0
      %296 = vmatprep.subr.bf16.mxu0 0
      %297 = vmatpush1.bf16.msra.mxu0 0
      %298 = vmatprep.subr.bf16.mxu0 0
      %299 = vmatpush1.bf16.msra.mxu0 0
      %300 = vmatprep.subr.bf16.mxu0 0
      %301 = vmatpush1.bf16.msra.mxu0 0
      %302 = vmatprep.subr.bf16.mxu0 0
      %303 = vmatpush1.bf16.msra.mxu0 %v282
      %304 = vmatprep.subr.bf16.mxu0 0
      %305 = vmatpush2.bf16.msra.mxu0 0
      %306 = vmatprep.subr.bf16.mxu0 0
      %307 = vmatpush2.bf16.msra.mxu0 0
      %308 = vmatprep.subr.bf16.mxu0 0
      %309 = vmatpush2.bf16.msra.mxu0 0
      %310 = vmatprep.subr.bf16.mxu0 0
      %311 = vmatpush2.bf16.msra.mxu0 0
      %312 = vmatprep.subr.bf16.mxu0 0
      %313 = vmatpush2.bf16.msra.mxu0 0
      %314 = vmatprep.subr.bf16.mxu0 0
      %315 = vmatpush2.bf16.msra.mxu0 0
      %316 = vmatprep.subr.bf16.mxu0 0
      %317 = vmatpush2.bf16.msra.mxu0 0
      %318 = vmatprep.subr.bf16.mxu0 0
      %319 = vmatpush2.bf16.msra.mxu0 0
      %320 = vmatprep.mubr.bf16.mxu0 0
      %321 = vmatmul.mubr.bf16.gmra.mxu0 %v286
      %v322 = vpop.f32.mrf.mxu0
      %v323 = vadd.f32 %v266, %v322
      %v324 = vpop.f32.mrf.mxu0
      %v325 = vpop.f32.mrf.mxu0
      %v326 = vadd.f32 %v271, %v325
      %v327 = vpop.f32.mrf.mxu0
      %328 = vdwg.mxu0
      %v329 = vmax.f32 %v323, 0.0
      %v330 = vmax.f32 %v326, 0.0
      %v331 = vld [vmem:[%s3] sm:$0xff]
      %v332 = vld [vmem:[%s3 + $0x8] sm:$0xff]
      %334 = vset.pattern.permute.xlu0 0
      %335 = vperm.xlu0 %334, %v331
      %v336 = vpop.permute.xlu0 %335
      %339 = vset.pattern.permute.xlu0 0
      %340 = vperm.xlu0 %339, %v332
      %v341 = vpop.permute.xlu0 %340
      %v343 = vmul.f32 %v329, %v336
      %v344 = vmul.f32 %v330, %v341
      %v345 = vld [vmem:[%s4] sm:$0xff]
      %v346 = vld [vmem:[%s4 + $0x8] sm:$0xff]
      %348 = vset.pattern.permute.xlu0 0
      %349 = vperm.xlu0 %348, %v345
      %v350 = vpop.permute.xlu0 %349
      %353 = vset.pattern.permute.xlu0 0
      %354 = vperm.xlu0 %353, %v346
      %v355 = vpop.permute.xlu0 %354
      %v357 = vadd.f32 %v343, %v350
      %v358 = vadd.f32 %v344, %v355
      %359 = vst [vmem:[%s255] sm:$0xff] %v357
      %360 = vst [vmem:[%s255 + $0x8] sm:$0xff] %v358
      %p361 = scmp.lt.s32.totalorder %s20, 1
      %s362 = scalar_select %p361, %s20, 1
      %p363 = scmp.lt.s32.totalorder %s21, 0
      %s364 = scalar_select %p363, %s21, 0
      %s365 = smul.addr %s362, 2
      %s366 = sadd.s32 %s364, %s365
      %s367 = smul.addr %s366, 8
      %s368 = scalar_lea.vmem %s5, %s367
      // Predicated region
      $region41: #{tcn_block.3} parent=39 // pred_check
        %p369 = pneg %p160
      $region42: #{tcn_block.3} parent=39 // pred_check_branch
        %371 = sbr.rel (%p369) target = $region44
      $region43: #{tcn_block.3} parent=39 // pred_region
        _
      $region44: #{tcn_block.3} parent=39 // pred_fallthru
        _
    $region40: #{tcn_block.3} parent=5 // pred_fallthru
      _
    %p372 = scmp.le.s32.totalorder 2, %s11
    // Predicated region
    $region45: #{tcn_block.3} parent=5 // pred_check
      %p373 = pneg %p372
    $region46: #{tcn_block.3} parent=5 // pred_check_branch
      %375 = sbr.rel (%p373) target = $region48
    $region47: #{tcn_block.3} parent=5 // pred_region
      %s376 = ssub.s32 %s11, 2
      // Predicated region
      $region49: #{tcn_block.3} parent=47 // pred_check
        %p377 = pneg %p166
      $region50: #{tcn_block.3} parent=47 // pred_check_branch
        %379 = sbr.rel (%p377) target = $region52
      $region51: #{tcn_block.3} parent=47 // pred_region
        %p380 = scmp.lt.s32.totalorder %s22, 1
        %s381 = scalar_select %p380, %s22, 1
        %p382 = scmp.lt.s32.totalorder %s23, 0
        %s383 = scalar_select %p382, %s23, 0
        %s384 = smul.addr %s381, 2
        %s385 = sadd.s32 %s383, %s384
        %s386 = smul.addr %s385, 8
        %s387 = scalar_lea.vmem %s5, %s386
      $region52: #{tcn_block.3} parent=47 // pred_fallthru
        _
    $region48: #{tcn_block.3} parent=5 // pred_fallthru
      _
  $region6: #{tcn_block.3} parent=0 // loop_footer
    %s15 = sadd.s32 1, %s11
  $region7: #{tcn_block.3} parent=0 // loop_footer_branch
    %10 = sbr.rel target = $region3
  $region8: #{tcn_block.3} parent=0 // loop_exit
    _

</llo_original>
